<compile_context>
chip_gen: v7x
topology: tpu7x:2x2x1
jax: 0.10.0
libtpu: 0.0.40
codegen_flags: <defaults>
</compile_context>

<pallas_src>
import functools
import math

import jax
import jax.numpy as jnp
from jax.experimental import pallas as pl
from jax.experimental.pallas import tpu as pltpu

HIDDEN_DIM = 128
NUM_HIDDEN_LAYERS = 4   # matches the PyTorch module: 4 ReLU hidden layers + output layer
LANE = 128


def _round_up(x: int, m: int) -> int:
    return ((x + m - 1) // m) * m


# ----------------------------------------------------------------------------- kernels

def _mlp_resident_kernel(x_ref,
                         w1_ref, b1_ref, w2_ref, b2_ref, w3_ref, b3_ref,
                         w4_ref, b4_ref, w5_ref, b5_ref,
                         o_ref):
    """One batch tile; all weights resident in VMEM, x tile streamed as f32."""
    # In-kernel f32 -> bf16 cast (no standalone convert pass over HBM in the wrapper).
    x = x_ref[...].astype(w1_ref.dtype)
    h = jnp.dot(x, w1_ref[...], preferred_element_type=jnp.float32) + b1_ref[...]
    h = jnp.maximum(h, 0.0)
    for w_ref, b_ref in ((w2_ref, b2_ref), (w3_ref, b3_ref), (w4_ref, b4_ref)):
        h = jnp.dot(h.astype(w_ref.dtype), w_ref[...],
                    preferred_element_type=jnp.float32) + b_ref[...]
        h = jnp.maximum(h, 0.0)
    logits = jnp.dot(h.astype(w5_ref.dtype), w5_ref[...],
                     preferred_element_type=jnp.float32) + b5_ref[...]
    o_ref[...] = logits.astype(o_ref.dtype)


def _mlp_ktiled_kernel(x_ref,
                       w1_ref, b1_ref, w2_ref, b2_ref, w3_ref, b3_ref,
                       w4_ref, b4_ref, w5_ref, b5_ref,
                       o_ref, acc_ref):
    """Layer-1 K-tiled variant for large in_dim: x and W1 streamed along K."""
    k = pl.program_id(1)

    @pl.when(k == 0)
    def _():
        acc_ref[...] = jnp.zeros_like(acc_ref)

    x = x_ref[...].astype(w1_ref.dtype)
    acc_ref[...] += jnp.dot(x, w1_ref[...], preferred_element_type=jnp.float32)

    @pl.when(k == pl.num_programs(1) - 1)
    def _():
        h = jnp.maximum(acc_ref[...] + b1_ref[...], 0.0)
        for w_ref, b_ref in ((w2_ref, b2_ref), (w3_ref, b3_ref), (w4_ref, b4_ref)):
            h = jnp.dot(h.astype(w_ref.dtype), w_ref[...],
                        preferred_element_type=jnp.float32) + b_ref[...]
            h = jnp.maximum(h, 0.0)
        logits = jnp.dot(h.astype(w5_ref.dtype), w5_ref[...],
                         preferred_element_type=jnp.float32) + b5_ref[...]
        o_ref[...] = logits.astype(o_ref.dtype)


# ------------------------------------------------------------------------------ params

def init_params(key, h=64, w=64, num_classes=6, hidden_dim=HIDDEN_DIM,
                num_layers=NUM_HIDDEN_LAYERS):
    """PyTorch-style U[-1/sqrt(fan_in), 1/sqrt(fan_in)] init.

    Weights are stored transposed relative to nn.Linear: (in_features, out_features).
    """
    in_dim = 3 * h * w
    dims = [in_dim] + [hidden_dim] * num_layers + [num_classes]
    params = []
    for i in range(len(dims) - 1):
        fan_in, fan_out = dims[i], dims[i + 1]
        key, kw, kb = jax.random.split(key, 3)
        bound = 1.0 / jnp.sqrt(jnp.float32(fan_in))
        W = jax.random.uniform(kw, (fan_in, fan_out), jnp.float32, -bound, bound)
        b = jax.random.uniform(kb, (1, fan_out), jnp.float32, -bound, bound)
        params.append((W, b))
    return params


# ----------------------------------------------------------------------------- wrapper

@functools.partial(jax.jit,
                   static_argnames=("num_classes", "tile_b", "k_tile", "compute_dtype"))
def mlp_classifier_deep_forward(x_nchw, params, num_classes=6, *,
                                tile_b=None, k_tile=None, compute_dtype=jnp.bfloat16):
    """x_nchw: (b, 3, H, W) float32 -> (b, num_classes) float32 logits."""
    b = x_nchw.shape[0]
    in_dim = math.prod(x_nchw.shape[1:])
    # Same flattening order as torch's x.view(b, -1). Stays f32: the bf16 cast happens
    # inside the kernel, so no standalone convert op touches x in HBM.
    x_flat = x_nchw.reshape(b, in_dim)

    out_pad = _round_up(num_classes, LANE)   # lane-dense (unmasked) output stores

    # ---- parameter prep (one-time, tiny vs. streaming x) ----
    flat_params = []
    n_layers = len(params)
    for i, (W, bias) in enumerate(params):
        W = W.astype(compute_dtype)
        bias = bias.reshape(1, -1).astype(jnp.float32)
        if i == n_layers - 1 and W.shape[1] != out_pad:
            W = jnp.pad(W, ((0, 0), (0, out_pad - W.shape[1])))
            bias = jnp.pad(bias, ((0, 0), (0, out_pad - bias.shape[1])))
        flat_params.extend([W, bias])

    # ---- path selection (shape-derived, static under jit) ----
    # Resident path = W1 (bf16) fully resident + double-buffered (tile_b, in_dim) f32 x
    # tile.  If even a 128-row f32 tile plus W1 would not fit comfortably, use the
    # layer-1 K-tiled path instead.
    resident_floor_bytes = in_dim * HIDDEN_DIM * 2 + 2 * 128 * in_dim * 4
    use_ktiled = (k_tile is not None) or (resident_floor_bytes > (40 << 20))

    if use_ktiled:
        if k_tile is None:
            # Prefer a 128-multiple K tile that divides in_dim exactly (no K padding).
            hi = min(8192, _round_up(in_dim, LANE))
            k_tile = next((c for c in range(hi, 0, -LANE) if in_dim % c == 0), hi)
        stream_cols = k_tile
    else:
        stream_cols = in_dim

    if tile_b is None:
        # Keep the double-buffered f32 x tile at <= ~24 MiB -> headroom under the
        # 48 MiB scoped limit (v5e/v6e) and v7x's 64 MiB physical VMEM.
        cap = max(8, min(512, (24 << 20) // (2 * stream_cols * 4) // 8 * 8))
        if b <= 16:
            tile_b = b                      # tiny batch: one full-batch block, zero waste
        else:
            half = -(-b // 2)               # >=2 grid steps so both v7x TCs get work
            tile_b = _round_up(half, 128) if half >= 128 else _round_up(half, 8)
        tile_b = max(1, min(tile_b, cap))

    flops = 2 * b * (in_dim * HIDDEN_DIM
                     + (NUM_HIDDEN_LAYERS - 1) * HIDDEN_DIM * HIDDEN_DIM
                     + HIDDEN_DIM * out_pad)
    param_bytes = sum(int(p.size) * p.dtype.itemsize for p in flat_params)

    if not use_ktiled:
        grid = (pl.cdiv(b, tile_b),)
        x_spec = pl.BlockSpec((tile_b, in_dim), lambda i: (i, 0))
        # Constant index maps -> weights/biases DMA'd once, resident across grid steps.
        # (If a Mosaic build still double-buffers these, pipeline_mode=pl.Buffered(1)
        #  on the weight specs recovers ~3 MiB of VMEM on v7x.)
        param_specs = [pl.BlockSpec(p.shape, lambda i: (0, 0)) for p in flat_params]
        out_spec = pl.BlockSpec((tile_b, out_pad), lambda i: (i, 0))

        out = pl.pallas_call(
            _mlp_resident_kernel,
            out_shape=jax.ShapeDtypeStruct((b, out_pad), jnp.bfloat16),
            grid=grid,
            in_specs=[x_spec] + param_specs,
            out_specs=out_spec,
            compiler_params=pltpu.CompilerParams(
                dimension_semantics=("parallel",),
                vmem_limit_bytes=48 << 20),
            cost_estimate=pl.CostEstimate(
                flops=flops, transcendentals=0,
                bytes_accessed=int(b * in_dim * 4 + param_bytes + b * out_pad * 2)),
        )(x_flat, *flat_params)
    else:
        in_dim_pad = _round_up(in_dim, k_tile)
        if in_dim_pad != in_dim:
            # Rare: no 128-multiple K tile divides in_dim; zero-pad K (extra pass over x).
            x_flat = jnp.pad(x_flat, ((0, 0), (0, in_dim_pad - in_dim)))
            flat_params[0] = jnp.pad(flat_params[0],
                                     ((0, in_dim_pad - in_dim), (0, 0)))
        nk = in_dim_pad // k_tile

        grid = (pl.cdiv(b, tile_b), nk)                 # reduction (K) axis last
        x_spec = pl.BlockSpec((tile_b, k_tile), lambda i, k: (i, k))
        w1_spec = pl.BlockSpec((k_tile, HIDDEN_DIM), lambda i, k: (k, 0))
        rest_specs = [pl.BlockSpec(p.shape, lambda i, k: (0, 0))
                      for p in flat_params[1:]]
        out_spec = pl.BlockSpec((tile_b, out_pad), lambda i, k: (i, 0))

        out = pl.pallas_call(
            _mlp_ktiled_kernel,
            out_shape=jax.ShapeDtypeStruct((b, out_pad), jnp.bfloat16),
            grid=grid,
            in_specs=[x_spec, w1_spec] + rest_specs,
            out_specs=out_spec,
            scratch_shapes=[pltpu.VMEM((tile_b, HIDDEN_DIM), jnp.float32)],
            compiler_params=pltpu.CompilerParams(
                dimension_semantics=("parallel", "arbitrary"),
                vmem_limit_bytes=48 << 20),
            cost_estimate=pl.CostEstimate(
                flops=flops, transcendentals=0,
                bytes_accessed=int(b * in_dim_pad * 4 + param_bytes + b * out_pad * 2)),
        )(x_flat, *flat_params)

    return out[:, :num_classes].astype(jnp.float32)


# --------------------------------------------------------------------------- reference

def _reference_forward(x_nchw, params, compute_dtype=jnp.bfloat16):
    """Pure-JAX reference with the same bf16-operand / f32-accumulate recipe."""
    b = x_nchw.shape[0]
    h = x_nchw.reshape(b, -1)
    n = len(params)
    for i, (W, bias) in enumerate(params):
        h = jnp.dot(h.astype(compute_dtype), W.astype(compute_dtype),
                    preferred_element_type=jnp.float32) + bias.reshape(1, -1)
        if i < n - 1:
            h = jnp.maximum(h, 0.0)
    return h


if __name__ == "__main__":
    # Small shapes: image 3 x 16 x 16 (in_dim = 768), hidden=128, 6 classes.
    H, W, NUM_CLASSES = 16, 16, 6
    key = jax.random.PRNGKey(0)
    key, kx1, kx2, kx3 = jax.random.split(key, 4)

    params = init_params(key, h=H, w=W, num_classes=NUM_CLASSES)

    # 1) Resident-weight path, tiny batch -> single full-batch block.
    x1 = jax.random.normal(kx1, (2, 3, H, W), jnp.float32)
    out1 = jax.block_until_ready(
        mlp_classifier_deep_forward(x1, params, num_classes=NUM_CLASSES))
    ref1 = _reference_forward(x1, params)
    assert out1.shape == (2, NUM_CLASSES), out1.shape
    err1 = float(jnp.max(jnp.abs(out1 - ref1)))
    assert jnp.allclose(out1, ref1, atol=2e-2, rtol=2e-2), f"resident(tiny) err {err1}"

    # 2) Resident-weight path with a forced tile_b that does not divide the batch
    #    -> exercises the ragged last block (no wrapper-side batch padding).
    x2 = jax.random.normal(kx2, (20, 3, H, W), jnp.float32)
    out2 = jax.block_until_ready(
        mlp_classifier_deep_forward(x2, params, num_classes=NUM_CLASSES, tile_b=16))
    ref2 = _reference_forward(x2, params)
    assert out2.shape == (20, NUM_CLASSES), out2.shape
    err2 = float(jnp.max(jnp.abs(out2 - ref2)))
    assert jnp.allclose(out2, ref2, atol=2e-2, rtol=2e-2), f"resident(ragged) err {err2}"

    # 3) K-tiled layer-1 path (forced via k_tile), the fallback used for large images.
    x3 = jax.random.normal(kx3, (10, 3, H, W), jnp.float32)
    out3 = jax.block_until_ready(
        mlp_classifier_deep_forward(x3, params, num_classes=NUM_CLASSES, k_tile=256))
    ref3 = _reference_forward(x3, params)
    assert out3.shape == (10, NUM_CLASSES), out3.shape
    err3 = float(jnp.max(jnp.abs(out3 - ref3)))
    assert jnp.allclose(out3, ref3, atol=2e-2, rtol=2e-2), f"k-tiled err {err3}"

    print("KERNEL_OK")
</pallas_src>

<mosaic_0001>
module attributes {stable_mosaic.version = 11 : i64} {
  func.func @_mlp_resident_kernel(%arg0: i32, %arg1: memref<2x768xf32, #tpu.memory_space<vmem>>, %arg2: memref<768x128xbf16, #tpu.memory_space<vmem>>, %arg3: memref<1x128xf32, #tpu.memory_space<vmem>>, %arg4: memref<128x128xbf16, #tpu.memory_space<vmem>>, %arg5: memref<1x128xf32, #tpu.memory_space<vmem>>, %arg6: memref<128x128xbf16, #tpu.memory_space<vmem>>, %arg7: memref<1x128xf32, #tpu.memory_space<vmem>>, %arg8: memref<128x128xbf16, #tpu.memory_space<vmem>>, %arg9: memref<1x128xf32, #tpu.memory_space<vmem>>, %arg10: memref<128x128xbf16, #tpu.memory_space<vmem>>, %arg11: memref<1x128xf32, #tpu.memory_space<vmem>>, %arg12: memref<2x128xbf16, #tpu.memory_space<vmem>>) attributes {dimension_semantics = [#tpu.dimension_semantics<parallel>], iteration_bounds = array<i64: 1>, scalar_prefetch = 0 : i64, scratch_operands = 0 : i64, tpu.core_type = #tpu.core_type<tc>, window_params = [{transform_indices = @transform_0, window_bounds = array<i64: 2, 768>}, {pipeline_mode = #tpu.pipeline_mode<synchronous>, transform_indices = @transform_1, window_bounds = array<i64: 768, 128>}, {pipeline_mode = #tpu.pipeline_mode<synchronous>, transform_indices = @transform_2, window_bounds = array<i64: 1, 128>}, {pipeline_mode = #tpu.pipeline_mode<synchronous>, transform_indices = @transform_3, window_bounds = array<i64: 128, 128>}, {pipeline_mode = #tpu.pipeline_mode<synchronous>, transform_indices = @transform_4, window_bounds = array<i64: 1, 128>}, {pipeline_mode = #tpu.pipeline_mode<synchronous>, transform_indices = @transform_5, window_bounds = array<i64: 128, 128>}, {pipeline_mode = #tpu.pipeline_mode<synchronous>, transform_indices = @transform_6, window_bounds = array<i64: 1, 128>}, {pipeline_mode = #tpu.pipeline_mode<synchronous>, transform_indices = @transform_7, window_bounds = array<i64: 128, 128>}, {pipeline_mode = #tpu.pipeline_mode<synchronous>, transform_indices = @transform_8, window_bounds = array<i64: 1, 128>}, {pipeline_mode = #tpu.pipeline_mode<synchronous>, transform_indices = @transform_9, window_bounds = array<i64: 128, 128>}, {pipeline_mode = #tpu.pipeline_mode<synchronous>, transform_indices = @transform_10, window_bounds = array<i64: 1, 128>}, {transform_indices = @transform_11, window_bounds = array<i64: 2, 128>}]} {
    %c0 = arith.constant 0 : index
    %c0_0 = arith.constant 0 : index
    %0 = vector.load %arg1[%c0, %c0_0] : memref<2x768xf32, #tpu.memory_space<vmem>>, vector<2x768xf32>
    %1 = arith.truncf %0 : vector<2x768xf32> to vector<2x768xbf16>
    %c0_1 = arith.constant 0 : index
    %c0_2 = arith.constant 0 : index
    %2 = vector.load %arg2[%c0_1, %c0_2] : memref<768x128xbf16, #tpu.memory_space<vmem>>, vector<768x128xbf16>
    %cst = arith.constant dense<0.000000e+00> : vector<2x128xf32>
    %3 = tpu.matmul %1, %2, %cst {dimension_numbers = #tpu.dot_dimension_numbers<[1], [0], [0], [1], [0, 0, 1, 1], [], []>} : vector<2x768xbf16>, vector<768x128xbf16>, vector<2x128xf32> -> vector<2x128xf32>
    %c0_3 = arith.constant 0 : index
    %c0_4 = arith.constant 0 : index
    %4 = vector.load %arg3[%c0_3, %c0_4] : memref<1x128xf32, #tpu.memory_space<vmem>>, vector<1x128xf32>
    %5 = vector.broadcast %4 : vector<1x128xf32> to vector<2x128xf32>
    %6 = arith.addf %3, %5 : vector<2x128xf32>
    %cst_5 = arith.constant 0.000000e+00 : f32
    %7 = vector.broadcast %cst_5 : f32 to vector<2x128xf32>
    %8 = arith.maximumf %6, %7 : vector<2x128xf32>
    %9 = arith.truncf %8 : vector<2x128xf32> to vector<2x128xbf16>
    %c0_6 = arith.constant 0 : index
    %c0_7 = arith.constant 0 : index
    %10 = vector.load %arg4[%c0_6, %c0_7] : memref<128x128xbf16, #tpu.memory_space<vmem>>, vector<128x128xbf16>
    %cst_8 = arith.constant dense<0.000000e+00> : vector<2x128xf32>
    %11 = tpu.matmul %9, %10, %cst_8 {dimension_numbers = #tpu.dot_dimension_numbers<[1], [0], [0], [1], [0, 0, 1, 1], [], []>} : vector<2x128xbf16>, vector<128x128xbf16>, vector<2x128xf32> -> vector<2x128xf32>
    %c0_9 = arith.constant 0 : index
    %c0_10 = arith.constant 0 : index
    %12 = vector.load %arg5[%c0_9, %c0_10] : memref<1x128xf32, #tpu.memory_space<vmem>>, vector<1x128xf32>
    %13 = vector.broadcast %12 : vector<1x128xf32> to vector<2x128xf32>
    %14 = arith.addf %11, %13 : vector<2x128xf32>
    %cst_11 = arith.constant 0.000000e+00 : f32
    %15 = vector.broadcast %cst_11 : f32 to vector<2x128xf32>
    %16 = arith.maximumf %14, %15 : vector<2x128xf32>
    %17 = arith.truncf %16 : vector<2x128xf32> to vector<2x128xbf16>
    %c0_12 = arith.constant 0 : index
    %c0_13 = arith.constant 0 : index
    %18 = vector.load %arg6[%c0_12, %c0_13] : memref<128x128xbf16, #tpu.memory_space<vmem>>, vector<128x128xbf16>
    %cst_14 = arith.constant dense<0.000000e+00> : vector<2x128xf32>
    %19 = tpu.matmul %17, %18, %cst_14 {dimension_numbers = #tpu.dot_dimension_numbers<[1], [0], [0], [1], [0, 0, 1, 1], [], []>} : vector<2x128xbf16>, vector<128x128xbf16>, vector<2x128xf32> -> vector<2x128xf32>
    %c0_15 = arith.constant 0 : index
    %c0_16 = arith.constant 0 : index
    %20 = vector.load %arg7[%c0_15, %c0_16] : memref<1x128xf32, #tpu.memory_space<vmem>>, vector<1x128xf32>
    %21 = vector.broadcast %20 : vector<1x128xf32> to vector<2x128xf32>
    %22 = arith.addf %19, %21 : vector<2x128xf32>
    %cst_17 = arith.constant 0.000000e+00 : f32
    %23 = vector.broadcast %cst_17 : f32 to vector<2x128xf32>
    %24 = arith.maximumf %22, %23 : vector<2x128xf32>
    %25 = arith.truncf %24 : vector<2x128xf32> to vector<2x128xbf16>
    %c0_18 = arith.constant 0 : index
    %c0_19 = arith.constant 0 : index
    %26 = vector.load %arg8[%c0_18, %c0_19] : memref<128x128xbf16, #tpu.memory_space<vmem>>, vector<128x128xbf16>
    %cst_20 = arith.constant dense<0.000000e+00> : vector<2x128xf32>
    %27 = tpu.matmul %25, %26, %cst_20 {dimension_numbers = #tpu.dot_dimension_numbers<[1], [0], [0], [1], [0, 0, 1, 1], [], []>} : vector<2x128xbf16>, vector<128x128xbf16>, vector<2x128xf32> -> vector<2x128xf32>
    %c0_21 = arith.constant 0 : index
    %c0_22 = arith.constant 0 : index
    %28 = vector.load %arg9[%c0_21, %c0_22] : memref<1x128xf32, #tpu.memory_space<vmem>>, vector<1x128xf32>
    %29 = vector.broadcast %28 : vector<1x128xf32> to vector<2x128xf32>
    %30 = arith.addf %27, %29 : vector<2x128xf32>
    %cst_23 = arith.constant 0.000000e+00 : f32
    %31 = vector.broadcast %cst_23 : f32 to vector<2x128xf32>
    %32 = arith.maximumf %30, %31 : vector<2x128xf32>
    %33 = arith.truncf %32 : vector<2x128xf32> to vector<2x128xbf16>
    %c0_24 = arith.constant 0 : index
    %c0_25 = arith.constant 0 : index
    %34 = vector.load %arg10[%c0_24, %c0_25] : memref<128x128xbf16, #tpu.memory_space<vmem>>, vector<128x128xbf16>
    %cst_26 = arith.constant dense<0.000000e+00> : vector<2x128xf32>
    %35 = tpu.matmul %33, %34, %cst_26 {dimension_numbers = #tpu.dot_dimension_numbers<[1], [0], [0], [1], [0, 0, 1, 1], [], []>} : vector<2x128xbf16>, vector<128x128xbf16>, vector<2x128xf32> -> vector<2x128xf32>
    %c0_27 = arith.constant 0 : index
    %c0_28 = arith.constant 0 : index
    %36 = vector.load %arg11[%c0_27, %c0_28] : memref<1x128xf32, #tpu.memory_space<vmem>>, vector<1x128xf32>
    %37 = vector.broadcast %36 : vector<1x128xf32> to vector<2x128xf32>
    %38 = arith.addf %35, %37 : vector<2x128xf32>
    %39 = arith.truncf %38 : vector<2x128xf32> to vector<2x128xbf16>
    %c0_29 = arith.constant 0 : index
    %c0_30 = arith.constant 0 : index
    %40 = vector.load %arg12[%c0_29, %c0_30] : memref<2x128xbf16, #tpu.memory_space<vmem>>, vector<2x128xbf16>
    tpu.vector_store %arg12[%c0_29, %c0_30], %39 {strides = array<i32>} : memref<2x128xbf16, #tpu.memory_space<vmem>>, vector<2x128xbf16>,
    return
  }
  func.func @transform_0(%arg0: i32) -> (i32, i32) {
    %c0_i32 = arith.constant 0 : i32
    %c0_i32_0 = arith.constant 0 : i32
    return %arg0, %c0_i32 : i32, i32
  }
  func.func @transform_1(%arg0: i32) -> (i32, i32) {
    %c0_i32 = arith.constant 0 : i32
    %c0_i32_0 = arith.constant 0 : i32
    %c0_i32_1 = arith.constant 0 : i32
    return %c0_i32, %c0_i32_0 : i32, i32
  }
  func.func @transform_2(%arg0: i32) -> (i32, i32) {
    %c0_i32 = arith.constant 0 : i32
    %c0_i32_0 = arith.constant 0 : i32
    %c0_i32_1 = arith.constant 0 : i32
    return %c0_i32, %c0_i32_0 : i32, i32
  }
  func.func @transform_3(%arg0: i32) -> (i32, i32) {
    %c0_i32 = arith.constant 0 : i32
    %c0_i32_0 = arith.constant 0 : i32
    %c0_i32_1 = arith.constant 0 : i32
    return %c0_i32, %c0_i32_0 : i32, i32
  }
  func.func @transform_4(%arg0: i32) -> (i32, i32) {
    %c0_i32 = arith.constant 0 : i32
    %c0_i32_0 = arith.constant 0 : i32
    %c0_i32_1 = arith.constant 0 : i32
    return %c0_i32, %c0_i32_0 : i32, i32
  }
  func.func @transform_5(%arg0: i32) -> (i32, i32) {
    %c0_i32 = arith.constant 0 : i32
    %c0_i32_0 = arith.constant 0 : i32
    %c0_i32_1 = arith.constant 0 : i32
    return %c0_i32, %c0_i32_0 : i32, i32
  }
  func.func @transform_6(%arg0: i32) -> (i32, i32) {
    %c0_i32 = arith.constant 0 : i32
    %c0_i32_0 = arith.constant 0 : i32
    %c0_i32_1 = arith.constant 0 : i32
    return %c0_i32, %c0_i32_0 : i32, i32
  }
  func.func @transform_7(%arg0: i32) -> (i32, i32) {
    %c0_i32 = arith.constant 0 : i32
    %c0_i32_0 = arith.constant 0 : i32
    %c0_i32_1 = arith.constant 0 : i32
    return %c0_i32, %c0_i32_0 : i32, i32
  }
  func.func @transform_8(%arg0: i32) -> (i32, i32) {
    %c0_i32 = arith.constant 0 : i32
    %c0_i32_0 = arith.constant 0 : i32
    %c0_i32_1 = arith.constant 0 : i32
    return %c0_i32, %c0_i32_0 : i32, i32
  }
  func.func @transform_9(%arg0: i32) -> (i32, i32) {
    %c0_i32 = arith.constant 0 : i32
    %c0_i32_0 = arith.constant 0 : i32
    %c0_i32_1 = arith.constant 0 : i32
    return %c0_i32, %c0_i32_0 : i32, i32
  }
  func.func @transform_10(%arg0: i32) -> (i32, i32) {
    %c0_i32 = arith.constant 0 : i32
    %c0_i32_0 = arith.constant 0 : i32
    %c0_i32_1 = arith.constant 0 : i32
    return %c0_i32, %c0_i32_0 : i32, i32
  }
  func.func @transform_11(%arg0: i32) -> (i32, i32) {
    %c0_i32 = arith.constant 0 : i32
    %c0_i32_0 = arith.constant 0 : i32
    return %arg0, %c0_i32 : i32, i32
  }
}

</mosaic_0001>

<llo_original>
// kernel: mlp_classifier_deep_forward.1
$region0: #{mlp_classifier_deep_forward.1}
  #allocation0 [shape = 'u32[]', space=smem, size = 0x4, offset = 0x4, fixed_abs, tag = 'smem constant byte address 0x4 - core index']
  #allocation1 [shape = 'u32[144,128]{1,0:T(1,128)}', space=vmem, size = 0x12000, scoped, tag = 'internal scratch']
  %s0 = inlined_call_operand.vmem [shape: f32[2,768], index: 0, kind: input, shape index: {}]
  %s1 = inlined_call_operand.vmem [shape: bf16[768,128], index: 1, kind: input, shape index: {}]
  %s2 = inlined_call_operand.vmem [shape: f32[1,128], index: 2, kind: input, shape index: {}]
  %s3 = inlined_call_operand.vmem [shape: bf16[128,128], index: 3, kind: input, shape index: {}]
  %s4 = inlined_call_operand.vmem [shape: f32[1,128], index: 4, kind: input, shape index: {}]
  %s5 = inlined_call_operand.vmem [shape: bf16[128,128], index: 5, kind: input, shape index: {}]
  %s6 = inlined_call_operand.vmem [shape: f32[1,128], index: 6, kind: input, shape index: {}]
  %s7 = inlined_call_operand.vmem [shape: bf16[128,128], index: 7, kind: input, shape index: {}]
  %s8 = inlined_call_operand.vmem [shape: f32[1,128], index: 8, kind: input, shape index: {}]
  %s9 = inlined_call_operand.vmem [shape: bf16[128,128], index: 9, kind: input, shape index: {}]
  %s10 = inlined_call_operand.vmem [shape: f32[1,128], index: 10, kind: input, shape index: {}]
  %s11 = inlined_call_operand.vmem [shape: bf16[2,128], index: 11, kind: output, shape index: {}]
  %s12 = sld [smem:[#allocation0]]
  $region54: #{mlp_classifier_deep_forward.1} parent=0
    _
  %s14 = ssub.s32 1, %s12
  %s15 = scalar_select 0, %s14, %s12
  // Predicated region
  $region2: #{mlp_classifier_deep_forward.1} parent=0 // pred_check
    _
  $region3: #{mlp_classifier_deep_forward.1} parent=0 // pred_check_branch
    %17 = sbr.rel (0) target = $region5
  $region4: #{mlp_classifier_deep_forward.1} parent=0 // pred_region
    _
  $region5: #{mlp_classifier_deep_forward.1} parent=0 // pred_fallthru
    _
  // Predicated region
  $region6: #{mlp_classifier_deep_forward.1} parent=0 // pred_check
    _
  $region7: #{mlp_classifier_deep_forward.1} parent=0 // pred_check_branch
    %19 = sbr.rel (0) target = $region9
  $region8: #{mlp_classifier_deep_forward.1} parent=0 // pred_region
    _
  $region9: #{mlp_classifier_deep_forward.1} parent=0 // pred_fallthru
    _
  // Predicated region
  $region10: #{mlp_classifier_deep_forward.1} parent=0 // pred_check
    _
  $region11: #{mlp_classifier_deep_forward.1} parent=0 // pred_check_branch
    %21 = sbr.rel (0) target = $region13
  $region12: #{mlp_classifier_deep_forward.1} parent=0 // pred_region
    _
  $region13: #{mlp_classifier_deep_forward.1} parent=0 // pred_fallthru
    _
  // Predicated region
  $region14: #{mlp_classifier_deep_forward.1} parent=0 // pred_check
    _
  $region15: #{mlp_classifier_deep_forward.1} parent=0 // pred_check_branch
    %23 = sbr.rel (0) target = $region17
  $region16: #{mlp_classifier_deep_forward.1} parent=0 // pred_region
    _
  $region17: #{mlp_classifier_deep_forward.1} parent=0 // pred_fallthru
    _
  // Predicated region
  $region18: #{mlp_classifier_deep_forward.1} parent=0 // pred_check
    _
  $region19: #{mlp_classifier_deep_forward.1} parent=0 // pred_check_branch
    %25 = sbr.rel (0) target = $region21
  $region20: #{mlp_classifier_deep_forward.1} parent=0 // pred_region
    _
  $region21: #{mlp_classifier_deep_forward.1} parent=0 // pred_fallthru
    _
  // Predicated region
  $region22: #{mlp_classifier_deep_forward.1} parent=0 // pred_check
    _
  $region23: #{mlp_classifier_deep_forward.1} parent=0 // pred_check_branch
    %27 = sbr.rel (0) target = $region25
  $region24: #{mlp_classifier_deep_forward.1} parent=0 // pred_region
    _
  $region25: #{mlp_classifier_deep_forward.1} parent=0 // pred_fallthru
    _
  // Predicated region
  $region26: #{mlp_classifier_deep_forward.1} parent=0 // pred_check
    _
  $region27: #{mlp_classifier_deep_forward.1} parent=0 // pred_check_branch
    %29 = sbr.rel (0) target = $region29
  $region28: #{mlp_classifier_deep_forward.1} parent=0 // pred_region
    _
  $region29: #{mlp_classifier_deep_forward.1} parent=0 // pred_fallthru
    _
  // Predicated region
  $region30: #{mlp_classifier_deep_forward.1} parent=0 // pred_check
    _
  $region31: #{mlp_classifier_deep_forward.1} parent=0 // pred_check_branch
    %31 = sbr.rel (0) target = $region33
  $region32: #{mlp_classifier_deep_forward.1} parent=0 // pred_region
    _
  $region33: #{mlp_classifier_deep_forward.1} parent=0 // pred_fallthru
    _
  // Predicated region
  $region34: #{mlp_classifier_deep_forward.1} parent=0 // pred_check
    _
  $region35: #{mlp_classifier_deep_forward.1} parent=0 // pred_check_branch
    %33 = sbr.rel (0) target = $region37
  $region36: #{mlp_classifier_deep_forward.1} parent=0 // pred_region
    _
  $region37: #{mlp_classifier_deep_forward.1} parent=0 // pred_fallthru
    _
  // Predicated region
  $region38: #{mlp_classifier_deep_forward.1} parent=0 // pred_check
    _
  $region39: #{mlp_classifier_deep_forward.1} parent=0 // pred_check_branch
    %35 = sbr.rel (0) target = $region41
  $region40: #{mlp_classifier_deep_forward.1} parent=0 // pred_region
    _
  $region41: #{mlp_classifier_deep_forward.1} parent=0 // pred_fallthru
    _
  // Predicated region
  $region42: #{mlp_classifier_deep_forward.1} parent=0 // pred_check
    _
  $region43: #{mlp_classifier_deep_forward.1} parent=0 // pred_check_branch
    %37 = sbr.rel (0) target = $region45
  $region44: #{mlp_classifier_deep_forward.1} parent=0 // pred_region
    _
  $region45: #{mlp_classifier_deep_forward.1} parent=0 // pred_fallthru
    _
  %v39 = vld [vmem:[%s0] sm:$0xff]
  %v40 = vld [vmem:[%s0 + $0x8] sm:$0xf]
  %v43 = vcombine.high %v39, %v39
  %v45 = vunpack.c.l.s4 1983009808
  %v46 = vunpack.c.0.s8 %v45
  %v47 = vlaneseq
  %v48 = vshrl.u32 %v47, 7
  %v49 = vsub.s32 %v46, %v48
  %v50 = vrot.slane %v39, %v49
  %v52 = vunpack.c.l.s4 1983009808
  %v53 = vunpack.c.0.s8 %v52
  %v54 = vlaneseq
  %v55 = vshrl.u32 %v54, 7
  %v56 = vsub.s32 %v53, %v55
  %v57 = vrot.slane %v43, %v56
  %v58 = vcombine.high %v50, %v50
  %v59 = vcombine.high %v57, %v57
  %v61 = vunpack.c.l.s4 1983009808
  %v62 = vunpack.c.0.s8 %v61
  %v63 = vlaneseq
  %v64 = vshrl.u32 %v63, 7
  %v65 = vsub.s32 %v62, %v64
  %v66 = vrot.slane %v40, %v65
  %v67 = vcombine.high %v66, %v66
  %v74 = vpack.c.bf16 %v50, %v50
  %v75 = vpack.c.bf16 %v58, %v58
  %v76 = vpack.c.bf16 %v57, %v57
  %v77 = vpack.c.bf16 %v59, %v59
  %v78 = vpack.c.bf16 %v66, %v66
  %v79 = vpack.c.bf16 %v67, %v67
  %v80 = vld [vmem:[%s1] sm:$0xf]
  %v81 = vld [vmem:[%s1 + $0x4] sm:$0xf]
  %v82 = vld [vmem:[%s1 + $0x8] sm:$0xf]
  %v83 = vld [vmem:[%s1 + $0xc] sm:$0xf]
  %v84 = vld [vmem:[%s1 + $0x10] sm:$0xf]
  %v85 = vld [vmem:[%s1 + $0x14] sm:$0xf]
  %v86 = vld [vmem:[%s1 + $0x18] sm:$0xf]
  %v87 = vld [vmem:[%s1 + $0x1c] sm:$0xf]
  %v88 = vld [vmem:[%s1 + $0x20] sm:$0xf]
  %v89 = vld [vmem:[%s1 + $0x24] sm:$0xf]
  %v90 = vld [vmem:[%s1 + $0x28] sm:$0xf]
  %v91 = vld [vmem:[%s1 + $0x2c] sm:$0xf]
  %v92 = vld [vmem:[%s1 + $0x30] sm:$0xf]
  %v93 = vld [vmem:[%s1 + $0x34] sm:$0xf]
  %v94 = vld [vmem:[%s1 + $0x38] sm:$0xf]
  %v95 = vld [vmem:[%s1 + $0x3c] sm:$0xf]
  %v96 = vld [vmem:[%s1 + $0x40] sm:$0xf]
  %v97 = vld [vmem:[%s1 + $0x44] sm:$0xf]
  %v98 = vld [vmem:[%s1 + $0x48] sm:$0xf]
  %v99 = vld [vmem:[%s1 + $0x4c] sm:$0xf]
  %v100 = vld [vmem:[%s1 + $0x50] sm:$0xf]
  %v101 = vld [vmem:[%s1 + $0x54] sm:$0xf]
  %v102 = vld [vmem:[%s1 + $0x58] sm:$0xf]
  %v103 = vld [vmem:[%s1 + $0x5c] sm:$0xf]
  %v104 = vld [vmem:[%s1 + $0x60] sm:$0xf]
  %v105 = vld [vmem:[%s1 + $0x64] sm:$0xf]
  %v106 = vld [vmem:[%s1 + $0x68] sm:$0xf]
  %v107 = vld [vmem:[%s1 + $0x6c] sm:$0xf]
  %v108 = vld [vmem:[%s1 + $0x70] sm:$0xf]
  %v109 = vld [vmem:[%s1 + $0x74] sm:$0xf]
  %v110 = vld [vmem:[%s1 + $0x78] sm:$0xf]
  %v111 = vld [vmem:[%s1 + $0x7c] sm:$0xf]
  %v112 = vld [vmem:[%s1 + $0x80] sm:$0xf]
  %v113 = vld [vmem:[%s1 + $0x84] sm:$0xf]
  %v114 = vld [vmem:[%s1 + $0x88] sm:$0xf]
  %v115 = vld [vmem:[%s1 + $0x8c] sm:$0xf]
  %v116 = vld [vmem:[%s1 + $0x90] sm:$0xf]
  %v117 = vld [vmem:[%s1 + $0x94] sm:$0xf]
  %v118 = vld [vmem:[%s1 + $0x98] sm:$0xf]
  %v119 = vld [vmem:[%s1 + $0x9c] sm:$0xf]
  %v120 = vld [vmem:[%s1 + $0xa0] sm:$0xf]
  %v121 = vld [vmem:[%s1 + $0xa4] sm:$0xf]
  %v122 = vld [vmem:[%s1 + $0xa8] sm:$0xf]
  %v123 = vld [vmem:[%s1 + $0xac] sm:$0xf]
  %v124 = vld [vmem:[%s1 + $0xb0] sm:$0xf]
  %v125 = vld [vmem:[%s1 + $0xb4] sm:$0xf]
  %v126 = vld [vmem:[%s1 + $0xb8] sm:$0xf]
  %v127 = vld [vmem:[%s1 + $0xbc] sm:$0xf]
  %v128 = vld [vmem:[%s1 + $0xc0] sm:$0xf]
  %v129 = vld [vmem:[%s1 + $0xc4] sm:$0xf]
  %v130 = vld [vmem:[%s1 + $0xc8] sm:$0xf]
  %v131 = vld [vmem:[%s1 + $0xcc] sm:$0xf]
  %v132 = vld [vmem:[%s1 + $0xd0] sm:$0xf]
  %v133 = vld [vmem:[%s1 + $0xd4] sm:$0xf]
  %v134 = vld [vmem:[%s1 + $0xd8] sm:$0xf]
  %v135 = vld [vmem:[%s1 + $0xdc] sm:$0xf]
  %v136 = vld [vmem:[%s1 + $0xe0] sm:$0xf]
  %v137 = vld [vmem:[%s1 + $0xe4] sm:$0xf]
  %v138 = vld [vmem:[%s1 + $0xe8] sm:$0xf]
  %v139 = vld [vmem:[%s1 + $0xec] sm:$0xf]
  %v140 = vld [vmem:[%s1 + $0xf0] sm:$0xf]
  %v141 = vld [vmem:[%s1 + $0xf4] sm:$0xf]
  %v142 = vld [vmem:[%s1 + $0xf8] sm:$0xf]
  %v143 = vld [vmem:[%s1 + $0xfc] sm:$0xf]
  %v144 = vld [vmem:[%s1 + $0x100] sm:$0xf]
  %v145 = vld [vmem:[%s1 + $0x104] sm:$0xf]
  %v146 = vld [vmem:[%s1 + $0x108] sm:$0xf]
  %v147 = vld [vmem:[%s1 + $0x10c] sm:$0xf]
  %v148 = vld [vmem:[%s1 + $0x110] sm:$0xf]
  %v149 = vld [vmem:[%s1 + $0x114] sm:$0xf]
  %v150 = vld [vmem:[%s1 + $0x118] sm:$0xf]
  %v151 = vld [vmem:[%s1 + $0x11c] sm:$0xf]
  %v152 = vld [vmem:[%s1 + $0x120] sm:$0xf]
  %v153 = vld [vmem:[%s1 + $0x124] sm:$0xf]
  %v154 = vld [vmem:[%s1 + $0x128] sm:$0xf]
  %v155 = vld [vmem:[%s1 + $0x12c] sm:$0xf]
  %v156 = vld [vmem:[%s1 + $0x130] sm:$0xf]
  %v157 = vld [vmem:[%s1 + $0x134] sm:$0xf]
  %v158 = vld [vmem:[%s1 + $0x138] sm:$0xf]
  %v159 = vld [vmem:[%s1 + $0x13c] sm:$0xf]
  %v160 = vld [vmem:[%s1 + $0x140] sm:$0xf]
  %v161 = vld [vmem:[%s1 + $0x144] sm:$0xf]
  %v162 = vld [vmem:[%s1 + $0x148] sm:$0xf]
  %v163 = vld [vmem:[%s1 + $0x14c] sm:$0xf]
  %v164 = vld [vmem:[%s1 + $0x150] sm:$0xf]
  %v165 = vld [vmem:[%s1 + $0x154] sm:$0xf]
  %v166 = vld [vmem:[%s1 + $0x158] sm:$0xf]
  %v167 = vld [vmem:[%s1 + $0x15c] sm:$0xf]
  %v168 = vld [vmem:[%s1 + $0x160] sm:$0xf]
  %v169 = vld [vmem:[%s1 + $0x164] sm:$0xf]
  %v170 = vld [vmem:[%s1 + $0x168] sm:$0xf]
  %v171 = vld [vmem:[%s1 + $0x16c] sm:$0xf]
  %v172 = vld [vmem:[%s1 + $0x170] sm:$0xf]
  %v173 = vld [vmem:[%s1 + $0x174] sm:$0xf]
  %v174 = vld [vmem:[%s1 + $0x178] sm:$0xf]
  %v175 = vld [vmem:[%s1 + $0x17c] sm:$0xf]
  %v176 = vld [vmem:[%s2] sm:$0x1]
  %v178 = vlaneseq
  %v179 = vshrl.u32 %v178, 7
  %v180 = vsub.s32 0, %v179
  %v181 = vrot.slane %v176, %v180
  %v279 = vunpack.c.l.b16 %v80
  %v280 = vunpack.c.l.b16 %v81
  %v281 = vunpack.c.l.b16 %v82
  %v282 = vunpack.c.l.b16 %v83
  %v283 = vunpack.c.l.b16 %v84
  %v284 = vunpack.c.l.b16 %v85
  %v285 = vunpack.c.l.b16 %v86
  %v286 = vunpack.c.l.b16 %v87
  %v287 = vunpack.c.l.b16 %v88
  %v288 = vunpack.c.l.b16 %v89
  %v289 = vunpack.c.l.b16 %v90
  %v290 = vunpack.c.l.b16 %v91
  %v291 = vunpack.c.l.b16 %v92
  %v292 = vunpack.c.l.b16 %v93
  %v293 = vunpack.c.l.b16 %v94
  %v294 = vunpack.c.l.b16 %v95
  %v295 = vunpack.c.l.b16 %v96
  %v296 = vunpack.c.l.b16 %v97
  %v297 = vunpack.c.l.b16 %v98
  %v298 = vunpack.c.l.b16 %v99
  %v299 = vunpack.c.l.b16 %v100
  %v300 = vunpack.c.l.b16 %v101
  %v301 = vunpack.c.l.b16 %v102
  %v302 = vunpack.c.l.b16 %v103
  %v303 = vunpack.c.l.b16 %v104
  %v304 = vunpack.c.l.b16 %v105
  %v305 = vunpack.c.l.b16 %v106
  %v306 = vunpack.c.l.b16 %v107
  %v307 = vunpack.c.l.b16 %v108
  %v308 = vunpack.c.l.b16 %v109
  %v309 = vunpack.c.l.b16 %v110
  %v310 = vunpack.c.l.b16 %v111
  %v311 = vunpack.c.l.b16 %v112
  %v312 = vunpack.c.l.b16 %v113
  %v313 = vunpack.c.l.b16 %v114
  %v314 = vunpack.c.l.b16 %v115
  %v315 = vunpack.c.l.b16 %v116
  %v316 = vunpack.c.l.b16 %v117
  %v317 = vunpack.c.l.b16 %v118
  %v318 = vunpack.c.l.b16 %v119
  %v319 = vunpack.c.l.b16 %v120
  %v320 = vunpack.c.l.b16 %v121
  %v321 = vunpack.c.l.b16 %v122
  %v322 = vunpack.c.l.b16 %v123
  %v323 = vunpack.c.l.b16 %v124
  %v324 = vunpack.c.l.b16 %v125
  %v325 = vunpack.c.l.b16 %v126
  %v326 = vunpack.c.l.b16 %v127
  %v327 = vunpack.c.l.b16 %v128
  %v328 = vunpack.c.l.b16 %v129
  %v329 = vunpack.c.l.b16 %v130
  %v330 = vunpack.c.l.b16 %v131
  %v331 = vunpack.c.l.b16 %v132
  %v332 = vunpack.c.l.b16 %v133
  %v333 = vunpack.c.l.b16 %v134
  %v334 = vunpack.c.l.b16 %v135
  %v335 = vunpack.c.l.b16 %v136
  %v336 = vunpack.c.l.b16 %v137
  %v337 = vunpack.c.l.b16 %v138
  %v338 = vunpack.c.l.b16 %v139
  %v339 = vunpack.c.l.b16 %v140
  %v340 = vunpack.c.l.b16 %v141
  %v341 = vunpack.c.l.b16 %v142
  %v342 = vunpack.c.l.b16 %v143
  %v343 = vunpack.c.l.b16 %v144
  %v344 = vunpack.c.l.b16 %v145
  %v345 = vunpack.c.l.b16 %v146
  %v346 = vunpack.c.l.b16 %v147
  %v347 = vunpack.c.l.b16 %v148
  %v348 = vunpack.c.l.b16 %v149
  %v349 = vunpack.c.l.b16 %v150
  %v350 = vunpack.c.l.b16 %v151
  %v351 = vunpack.c.l.b16 %v152
  %v352 = vunpack.c.l.b16 %v153
  %v353 = vunpack.c.l.b16 %v154
  %v354 = vunpack.c.l.b16 %v155
  %v355 = vunpack.c.l.b16 %v156
  %v356 = vunpack.c.l.b16 %v157
  %v357 = vunpack.c.l.b16 %v158
  %v358 = vunpack.c.l.b16 %v159
  %v359 = vunpack.c.l.b16 %v160
  %v360 = vunpack.c.l.b16 %v161
  %v361 = vunpack.c.l.b16 %v162
  %v362 = vunpack.c.l.b16 %v163
  %v363 = vunpack.c.l.b16 %v164
  %v364 = vunpack.c.l.b16 %v165
  %v365 = vunpack.c.l.b16 %v166
  %v366 = vunpack.c.l.b16 %v167
  %v367 = vunpack.c.l.b16 %v168
  %v368 = vunpack.c.l.b16 %v169
  %v369 = vunpack.c.l.b16 %v170
  %v370 = vunpack.c.l.b16 %v171
  %v371 = vunpack.c.l.b16 %v172
  %v372 = vunpack.c.l.b16 %v173
  %v373 = vunpack.c.l.b16 %v174
  %v374 = vunpack.c.l.b16 %v175
  %v375 = vpack.c.b16 %v280, %v279
  %v376 = vpack.c.b16 %v282, %v281
  %v377 = vpack.c.b16 %v284, %v283
  %v378 = vpack.c.b16 %v286, %v285
  %v379 = vpack.c.b16 %v288, %v287
  %v380 = vpack.c.b16 %v290, %v289
  %v381 = vpack.c.b16 %v292, %v291
  %v382 = vpack.c.b16 %v294, %v293
  %v383 = vpack.c.b16 %v296, %v295
  %v384 = vpack.c.b16 %v298, %v297
  %v385 = vpack.c.b16 %v300, %v299
  %v386 = vpack.c.b16 %v302, %v301
  %v387 = vpack.c.b16 %v304, %v303
  %v388 = vpack.c.b16 %v306, %v305
  %v389 = vpack.c.b16 %v308, %v307
  %v390 = vpack.c.b16 %v310, %v309
  %v391 = vpack.c.b16 %v312, %v311
  %v392 = vpack.c.b16 %v314, %v313
  %v393 = vpack.c.b16 %v316, %v315
  %v394 = vpack.c.b16 %v318, %v317
  %v395 = vpack.c.b16 %v320, %v319
  %v396 = vpack.c.b16 %v322, %v321
  %v397 = vpack.c.b16 %v324, %v323
  %v398 = vpack.c.b16 %v326, %v325
  %v399 = vpack.c.b16 %v328, %v327
  %v400 = vpack.c.b16 %v330, %v329
  %v401 = vpack.c.b16 %v332, %v331
  %v402 = vpack.c.b16 %v334, %v333
  %v403 = vpack.c.b16 %v336, %v335
  %v404 = vpack.c.b16 %v338, %v337
  %v405 = vpack.c.b16 %v340, %v339
  %v406 = vpack.c.b16 %v342, %v341
  %v407 = vpack.c.b16 %v344, %v343
  %v408 = vpack.c.b16 %v346, %v345
  %v409 = vpack.c.b16 %v348, %v347
  %v410 = vpack.c.b16 %v350, %v349
  %v411 = vpack.c.b16 %v352, %v351
  %v412 = vpack.c.b16 %v354, %v353
  %v413 = vpack.c.b16 %v356, %v355
  %v414 = vpack.c.b16 %v358, %v357
  %v415 = vpack.c.b16 %v360, %v359
  %v416 = vpack.c.b16 %v362, %v361
  %v417 = vpack.c.b16 %v364, %v363
  %v418 = vpack.c.b16 %v366, %v365
  %v419 = vpack.c.b16 %v368, %v367
  %v420 = vpack.c.b16 %v370, %v369
  %v421 = vpack.c.b16 %v372, %v371
  %v422 = vpack.c.b16 %v374, %v373
  %471 = vmatprep.subr.bf16.mxu0 0
  %472 = vmatpush1.bf16.msra.mxu0 %v375
  %473 = vmatprep.subr.bf16.mxu0 0
  %474 = vmatpush1.bf16.msra.mxu0 %v376
  %475 = vmatprep.subr.bf16.mxu0 0
  %476 = vmatpush1.bf16.msra.mxu0 %v377
  %477 = vmatprep.subr.bf16.mxu0 0
  %478 = vmatpush1.bf16.msra.mxu0 %v378
  %479 = vmatprep.subr.bf16.mxu0 0
  %480 = vmatpush1.bf16.msra.mxu0 %v379
  %481 = vmatprep.subr.bf16.mxu0 0
  %482 = vmatpush1.bf16.msra.mxu0 %v380
  %483 = vmatprep.subr.bf16.mxu0 0
  %484 = vmatpush1.bf16.msra.mxu0 %v381
  %485 = vmatprep.subr.bf16.mxu0 0
  %486 = vmatpush1.bf16.msra.mxu0 %v382
  %487 = vmatprep.subr.bf16.mxu0 0
  %488 = vmatpush1.bf16.msra.mxu0 %v383
  %489 = vmatprep.subr.bf16.mxu0 0
  %490 = vmatpush1.bf16.msra.mxu0 %v384
  %491 = vmatprep.subr.bf16.mxu0 0
  %492 = vmatpush1.bf16.msra.mxu0 %v385
  %493 = vmatprep.subr.bf16.mxu0 0
  %494 = vmatpush1.bf16.msra.mxu0 %v386
  %495 = vmatprep.subr.bf16.mxu0 0
  %496 = vmatpush1.bf16.msra.mxu0 %v387
  %497 = vmatprep.subr.bf16.mxu0 0
  %498 = vmatpush1.bf16.msra.mxu0 %v388
  %499 = vmatprep.subr.bf16.mxu0 0
  %500 = vmatpush1.bf16.msra.mxu0 %v389
  %501 = vmatprep.subr.bf16.mxu0 0
  %502 = vmatpush1.bf16.msra.mxu0 %v390
  %503 = vmatprep.mubr.bf16.mxu0 %v75
  %504 = vmatmul.mubr.bf16.gmra.mrb[0].mxu0 %v74
  %v505 = vpop.f32.mrb[0].mxu0
  %v506 = vadd.f32 %v181, %v505
  %v507 = vpop.f32.mrb[0].mxu0
  %v508 = vpop.f32.mrb[0].mxu0
  %v509 = vpop.f32.mrb[0].mxu0
  %510 = vdwg.mxu0
  %511 = vmatprep.subr.bf16.mxu0 0
  %512 = vmatpush1.bf16.msra.mxu0 %v391
  %513 = vmatprep.subr.bf16.mxu0 0
  %514 = vmatpush1.bf16.msra.mxu0 %v392
  %515 = vmatprep.subr.bf16.mxu0 0
  %516 = vmatpush1.bf16.msra.mxu0 %v393
  %517 = vmatprep.subr.bf16.mxu0 0
  %518 = vmatpush1.bf16.msra.mxu0 %v394
  %519 = vmatprep.subr.bf16.mxu0 0
  %520 = vmatpush1.bf16.msra.mxu0 %v395
  %521 = vmatprep.subr.bf16.mxu0 0
  %522 = vmatpush1.bf16.msra.mxu0 %v396
  %523 = vmatprep.subr.bf16.mxu0 0
  %524 = vmatpush1.bf16.msra.mxu0 %v397
  %525 = vmatprep.subr.bf16.mxu0 0
  %526 = vmatpush1.bf16.msra.mxu0 %v398
  %527 = vmatprep.subr.bf16.mxu0 0
  %528 = vmatpush1.bf16.msra.mxu0 %v399
  %529 = vmatprep.subr.bf16.mxu0 0
  %530 = vmatpush1.bf16.msra.mxu0 %v400
  %531 = vmatprep.subr.bf16.mxu0 0
  %532 = vmatpush1.bf16.msra.mxu0 %v401
  %533 = vmatprep.subr.bf16.mxu0 0
  %534 = vmatpush1.bf16.msra.mxu0 %v402
  %535 = vmatprep.subr.bf16.mxu0 0
  %536 = vmatpush1.bf16.msra.mxu0 %v403
  %537 = vmatprep.subr.bf16.mxu0 0
  %538 = vmatpush1.bf16.msra.mxu0 %v404
  %539 = vmatprep.subr.bf16.mxu0 0
  %540 = vmatpush1.bf16.msra.mxu0 %v405
  %541 = vmatprep.subr.bf16.mxu0 0
  %542 = vmatpush1.bf16.msra.mxu0 %v406
  %543 = vmatprep.mubr.bf16.mxu0 %v77
  %544 = vmatmul.mubr.bf16.gmra.mrb[0].mxu0 %v76
  %v545 = vpop.f32.mrb[0].mxu0
  %v546 = vadd.f32 %v506, %v545
  %v547 = vpop.f32.mrb[0].mxu0
  %v548 = vpop.f32.mrb[0].mxu0
  %v549 = vpop.f32.mrb[0].mxu0
  %550 = vdwg.mxu0
  %551 = vmatprep.subr.bf16.mxu0 0
  %552 = vmatpush1.bf16.msra.mxu0 %v407
  %553 = vmatprep.subr.bf16.mxu0 0
  %554 = vmatpush1.bf16.msra.mxu0 %v408
  %555 = vmatprep.subr.bf16.mxu0 0
  %556 = vmatpush1.bf16.msra.mxu0 %v409
  %557 = vmatprep.subr.bf16.mxu0 0
  %558 = vmatpush1.bf16.msra.mxu0 %v410
  %559 = vmatprep.subr.bf16.mxu0 0
  %560 = vmatpush1.bf16.msra.mxu0 %v411
  %561 = vmatprep.subr.bf16.mxu0 0
  %562 = vmatpush1.bf16.msra.mxu0 %v412
  %563 = vmatprep.subr.bf16.mxu0 0
  %564 = vmatpush1.bf16.msra.mxu0 %v413
  %565 = vmatprep.subr.bf16.mxu0 0
  %566 = vmatpush1.bf16.msra.mxu0 %v414
  %567 = vmatprep.subr.bf16.mxu0 0
  %568 = vmatpush1.bf16.msra.mxu0 %v415
  %569 = vmatprep.subr.bf16.mxu0 0
  %570 = vmatpush1.bf16.msra.mxu0 %v416
  %571 = vmatprep.subr.bf16.mxu0 0
  %572 = vmatpush1.bf16.msra.mxu0 %v417
  %573 = vmatprep.subr.bf16.mxu0 0
  %574 = vmatpush1.bf16.msra.mxu0 %v418
  %575 = vmatprep.subr.bf16.mxu0 0
  %576 = vmatpush1.bf16.msra.mxu0 %v419
  %577 = vmatprep.subr.bf16.mxu0 0
  %578 = vmatpush1.bf16.msra.mxu0 %v420
  %579 = vmatprep.subr.bf16.mxu0 0
  %580 = vmatpush1.bf16.msra.mxu0 %v421
  %581 = vmatprep.subr.bf16.mxu0 0
  %582 = vmatpush1.bf16.msra.mxu0 %v422
  %583 = vmatprep.mubr.bf16.mxu0 %v79
  %584 = vmatmul.mubr.bf16.gmra.mrb[0].mxu0 %v78
  %v585 = vpop.f32.mrb[0].mxu0
  %v586 = vadd.f32 %v546, %v585
  %v587 = vpop.f32.mrb[0].mxu0
  %v588 = vpop.f32.mrb[0].mxu0
  %v589 = vpop.f32.mrb[0].mxu0
  %590 = vdwg.mxu0
  %v591 = vmax.f32 %v586, 0.0
  %v592 = vpack.c.bf16 %v591, %v591
  %v593 = vld [vmem:[%s3] sm:$0xf]
  %v594 = vld [vmem:[%s3 + $0x4] sm:$0xf]
  %v595 = vld [vmem:[%s3 + $0x8] sm:$0xf]
  %v596 = vld [vmem:[%s3 + $0xc] sm:$0xf]
  %v597 = vld [vmem:[%s3 + $0x10] sm:$0xf]
  %v598 = vld [vmem:[%s3 + $0x14] sm:$0xf]
  %v599 = vld [vmem:[%s3 + $0x18] sm:$0xf]
  %v600 = vld [vmem:[%s3 + $0x1c] sm:$0xf]
  %v601 = vld [vmem:[%s3 + $0x20] sm:$0xf]
  %v602 = vld [vmem:[%s3 + $0x24] sm:$0xf]
  %v603 = vld [vmem:[%s3 + $0x28] sm:$0xf]
  %v604 = vld [vmem:[%s3 + $0x2c] sm:$0xf]
  %v605 = vld [vmem:[%s3 + $0x30] sm:$0xf]
  %v606 = vld [vmem:[%s3 + $0x34] sm:$0xf]
  %v607 = vld [vmem:[%s3 + $0x38] sm:$0xf]
  %v608 = vld [vmem:[%s3 + $0x3c] sm:$0xf]
  %v609 = vld [vmem:[%s4] sm:$0x1]
  %v611 = vlaneseq
  %v612 = vshrl.u32 %v611, 7
  %v613 = vsub.s32 0, %v612
  %v614 = vrot.slane %v609, %v613
  %v632 = vunpack.c.l.b16 %v593
  %v633 = vunpack.c.l.b16 %v594
  %v634 = vunpack.c.l.b16 %v595
  %v635 = vunpack.c.l.b16 %v596
  %v636 = vunpack.c.l.b16 %v597
  %v637 = vunpack.c.l.b16 %v598
  %v638 = vunpack.c.l.b16 %v599
  %v639 = vunpack.c.l.b16 %v600
  %v640 = vunpack.c.l.b16 %v601
  %v641 = vunpack.c.l.b16 %v602
  %v642 = vunpack.c.l.b16 %v603
  %v643 = vunpack.c.l.b16 %v604
  %v644 = vunpack.c.l.b16 %v605
  %v645 = vunpack.c.l.b16 %v606
  %v646 = vunpack.c.l.b16 %v607
  %v647 = vunpack.c.l.b16 %v608
  %v648 = vpack.c.b16 %v633, %v632
  %v649 = vpack.c.b16 %v635, %v634
  %v650 = vpack.c.b16 %v637, %v636
  %v651 = vpack.c.b16 %v639, %v638
  %v652 = vpack.c.b16 %v641, %v640
  %v653 = vpack.c.b16 %v643, %v642
  %v654 = vpack.c.b16 %v645, %v644
  %v655 = vpack.c.b16 %v647, %v646
  %664 = vmatprep.subr.bf16.mxu0 0
  %665 = vmatpush1.bf16.msra.mxu0 %v648
  %666 = vmatprep.subr.bf16.mxu0 0
  %667 = vmatpush1.bf16.msra.mxu0 %v649
  %668 = vmatprep.subr.bf16.mxu0 0
  %669 = vmatpush1.bf16.msra.mxu0 %v650
  %670 = vmatprep.subr.bf16.mxu0 0
  %671 = vmatpush1.bf16.msra.mxu0 %v651
  %672 = vmatprep.subr.bf16.mxu0 0
  %673 = vmatpush1.bf16.msra.mxu0 %v652
  %674 = vmatprep.subr.bf16.mxu0 0
  %675 = vmatpush1.bf16.msra.mxu0 %v653
  %676 = vmatprep.subr.bf16.mxu0 0
  %677 = vmatpush1.bf16.msra.mxu0 %v654
  %678 = vmatprep.subr.bf16.mxu0 0
  %679 = vmatpush1.bf16.msra.mxu0 %v655
  %680 = vmatprep.subr.bf16.mxu0 0
  %681 = vmatpush1.bf16.msra.mxu0 0
  %682 = vmatprep.subr.bf16.mxu0 0
  %683 = vmatpush1.bf16.msra.mxu0 0
  %684 = vmatprep.subr.bf16.mxu0 0
  %685 = vmatpush1.bf16.msra.mxu0 0
  %686 = vmatprep.subr.bf16.mxu0 0
  %687 = vmatpush1.bf16.msra.mxu0 0
  %688 = vmatprep.subr.bf16.mxu0 0
  %689 = vmatpush1.bf16.msra.mxu0 0
  %690 = vmatprep.subr.bf16.mxu0 0
  %691 = vmatpush1.bf16.msra.mxu0 0
  %692 = vmatprep.subr.bf16.mxu0 0
  %693 = vmatpush1.bf16.msra.mxu0 0
  %694 = vmatprep.subr.bf16.mxu0 0
  %695 = vmatpush1.bf16.msra.mxu0 0
  %696 = vmatprep.mubr.bf16.mxu0 0
  %697 = vmatmul.mubr.bf16.gmra.mrb[0].mxu0 %v592
  %v698 = vpop.f32.mrb[0].mxu0
  %v699 = vadd.f32 %v614, %v698
  %v700 = vpop.f32.mrb[0].mxu0
  %v701 = vpop.f32.mrb[0].mxu0
  %v702 = vpop.f32.mrb[0].mxu0
  %703 = vdwg.mxu0
  %v704 = vmax.f32 %v699, 0.0
  %v705 = vpack.c.bf16 %v704, %v704
  %v706 = vld [vmem:[%s5] sm:$0xf]
  %v707 = vld [vmem:[%s5 + $0x4] sm:$0xf]
  %v708 = vld [vmem:[%s5 + $0x8] sm:$0xf]
  %v709 = vld [vmem:[%s5 + $0xc] sm:$0xf]
  %v710 = vld [vmem:[%s5 + $0x10] sm:$0xf]
  %v711 = vld [vmem:[%s5 + $0x14] sm:$0xf]
  %v712 = vld [vmem:[%s5 + $0x18] sm:$0xf]
  %v713 = vld [vmem:[%s5 + $0x1c] sm:$0xf]
  %v714 = vld [vmem:[%s5 + $0x20] sm:$0xf]
  %v715 = vld [vmem:[%s5 + $0x24] sm:$0xf]
  %v716 = vld [vmem:[%s5 + $0x28] sm:$0xf]
  %v717 = vld [vmem:[%s5 + $0x2c] sm:$0xf]
  %v718 = vld [vmem:[%s5 + $0x30] sm:$0xf]
  %v719 = vld [vmem:[%s5 + $0x34] sm:$0xf]
  %v720 = vld [vmem:[%s5 + $0x38] sm:$0xf]
  %v721 = vld [vmem:[%s5 + $0x3c] sm:$0xf]
  %v722 = vld [vmem:[%s6] sm:$0x1]
  %v724 = vlaneseq
  %v725 = vshrl.u32 %v724, 7
  %v726 = vsub.s32 0, %v725
  %v727 = vrot.slane %v722, %v726
  %v745 = vunpack.c.l.b16 %v706
  %v746 = vunpack.c.l.b16 %v707
  %v747 = vunpack.c.l.b16 %v708
  %v748 = vunpack.c.l.b16 %v709
  %v749 = vunpack.c.l.b16 %v710
  %v750 = vunpack.c.l.b16 %v711
  %v751 = vunpack.c.l.b16 %v712
  %v752 = vunpack.c.l.b16 %v713
  %v753 = vunpack.c.l.b16 %v714
  %v754 = vunpack.c.l.b16 %v715
  %v755 = vunpack.c.l.b16 %v716
  %v756 = vunpack.c.l.b16 %v717
  %v757 = vunpack.c.l.b16 %v718
  %v758 = vunpack.c.l.b16 %v719
  %v759 = vunpack.c.l.b16 %v720
  %v760 = vunpack.c.l.b16 %v721
  %v761 = vpack.c.b16 %v746, %v745
  %v762 = vpack.c.b16 %v748, %v747
  %v763 = vpack.c.b16 %v750, %v749
  %v764 = vpack.c.b16 %v752, %v751
  %v765 = vpack.c.b16 %v754, %v753
  %v766 = vpack.c.b16 %v756, %v755
  %v767 = vpack.c.b16 %v758, %v757
  %v768 = vpack.c.b16 %v760, %v759
  %777 = vmatprep.subr.bf16.mxu0 0
  %778 = vmatpush1.bf16.msra.mxu0 %v761
  %779 = vmatprep.subr.bf16.mxu0 0
  %780 = vmatpush1.bf16.msra.mxu0 %v762
  %781 = vmatprep.subr.bf16.mxu0 0
  %782 = vmatpush1.bf16.msra.mxu0 %v763
  %783 = vmatprep.subr.bf16.mxu0 0
  %784 = vmatpush1.bf16.msra.mxu0 %v764
  %785 = vmatprep.subr.bf16.mxu0 0
  %786 = vmatpush1.bf16.msra.mxu0 %v765
  %787 = vmatprep.subr.bf16.mxu0 0
  %788 = vmatpush1.bf16.msra.mxu0 %v766
  %789 = vmatprep.subr.bf16.mxu0 0
  %790 = vmatpush1.bf16.msra.mxu0 %v767
  %791 = vmatprep.subr.bf16.mxu0 0
  %792 = vmatpush1.bf16.msra.mxu0 %v768
  %793 = vmatprep.subr.bf16.mxu0 0
  %794 = vmatpush1.bf16.msra.mxu0 0
  %795 = vmatprep.subr.bf16.mxu0 0
  %796 = vmatpush1.bf16.msra.mxu0 0
  %797 = vmatprep.subr.bf16.mxu0 0
  %798 = vmatpush1.bf16.msra.mxu0 0
  %799 = vmatprep.subr.bf16.mxu0 0
  %800 = vmatpush1.bf16.msra.mxu0 0
  %801 = vmatprep.subr.bf16.mxu0 0
  %802 = vmatpush1.bf16.msra.mxu0 0
  %803 = vmatprep.subr.bf16.mxu0 0
  %804 = vmatpush1.bf16.msra.mxu0 0
  %805 = vmatprep.subr.bf16.mxu0 0
  %806 = vmatpush1.bf16.msra.mxu0 0
  %807 = vmatprep.subr.bf16.mxu0 0
  %808 = vmatpush1.bf16.msra.mxu0 0
  %809 = vmatprep.mubr.bf16.mxu0 0
  %810 = vmatmul.mubr.bf16.gmra.mrb[0].mxu0 %v705
  %v811 = vpop.f32.mrb[0].mxu0
  %v812 = vadd.f32 %v727, %v811
  %v813 = vpop.f32.mrb[0].mxu0
  %v814 = vpop.f32.mrb[0].mxu0
  %v815 = vpop.f32.mrb[0].mxu0
  %816 = vdwg.mxu0
  %v817 = vmax.f32 %v812, 0.0
  %v818 = vpack.c.bf16 %v817, %v817
  %v819 = vld [vmem:[%s7] sm:$0xf]
  %v820 = vld [vmem:[%s7 + $0x4] sm:$0xf]
  %v821 = vld [vmem:[%s7 + $0x8] sm:$0xf]
  %v822 = vld [vmem:[%s7 + $0xc] sm:$0xf]
  %v823 = vld [vmem:[%s7 + $0x10] sm:$0xf]
  %v824 = vld [vmem:[%s7 + $0x14] sm:$0xf]
  %v825 = vld [vmem:[%s7 + $0x18] sm:$0xf]
  %v826 = vld [vmem:[%s7 + $0x1c] sm:$0xf]
  %v827 = vld [vmem:[%s7 + $0x20] sm:$0xf]
  %v828 = vld [vmem:[%s7 + $0x24] sm:$0xf]
  %v829 = vld [vmem:[%s7 + $0x28] sm:$0xf]
  %v830 = vld [vmem:[%s7 + $0x2c] sm:$0xf]
  %v831 = vld [vmem:[%s7 + $0x30] sm:$0xf]
  %v832 = vld [vmem:[%s7 + $0x34] sm:$0xf]
  %v833 = vld [vmem:[%s7 + $0x38] sm:$0xf]
  %v834 = vld [vmem:[%s7 + $0x3c] sm:$0xf]
  %v835 = vld [vmem:[%s8] sm:$0x1]
  %v837 = vlaneseq
  %v838 = vshrl.u32 %v837, 7
  %v839 = vsub.s32 0, %v838
  %v840 = vrot.slane %v835, %v839
  %v858 = vunpack.c.l.b16 %v819
  %v859 = vunpack.c.l.b16 %v820
  %v860 = vunpack.c.l.b16 %v821
  %v861 = vunpack.c.l.b16 %v822
  %v862 = vunpack.c.l.b16 %v823
  %v863 = vunpack.c.l.b16 %v824
  %v864 = vunpack.c.l.b16 %v825
  %v865 = vunpack.c.l.b16 %v826
  %v866 = vunpack.c.l.b16 %v827
  %v867 = vunpack.c.l.b16 %v828
  %v868 = vunpack.c.l.b16 %v829
  %v869 = vunpack.c.l.b16 %v830
  %v870 = vunpack.c.l.b16 %v831
  %v871 = vunpack.c.l.b16 %v832
  %v872 = vunpack.c.l.b16 %v833
  %v873 = vunpack.c.l.b16 %v834
  %v874 = vpack.c.b16 %v859, %v858
  %v875 = vpack.c.b16 %v861, %v860
  %v876 = vpack.c.b16 %v863, %v862
  %v877 = vpack.c.b16 %v865, %v864
  %v878 = vpack.c.b16 %v867, %v866
  %v879 = vpack.c.b16 %v869, %v868
  %v880 = vpack.c.b16 %v871, %v870
  %v881 = vpack.c.b16 %v873, %v872
  %890 = vmatprep.subr.bf16.mxu0 0
  %891 = vmatpush1.bf16.msra.mxu0 %v874
  %892 = vmatprep.subr.bf16.mxu0 0
  %893 = vmatpush1.bf16.msra.mxu0 %v875
  %894 = vmatprep.subr.bf16.mxu0 0
  %895 = vmatpush1.bf16.msra.mxu0 %v876
  %896 = vmatprep.subr.bf16.mxu0 0
  %897 = vmatpush1.bf16.msra.mxu0 %v877
  %898 = vmatprep.subr.bf16.mxu0 0
  %899 = vmatpush1.bf16.msra.mxu0 %v878
  %900 = vmatprep.subr.bf16.mxu0 0
  %901 = vmatpush1.bf16.msra.mxu0 %v879
  %902 = vmatprep.subr.bf16.mxu0 0
  %903 = vmatpush1.bf16.msra.mxu0 %v880
  %904 = vmatprep.subr.bf16.mxu0 0
  %905 = vmatpush1.bf16.msra.mxu0 %v881
  %906 = vmatprep.subr.bf16.mxu0 0
  %907 = vmatpush1.bf16.msra.mxu0 0
  %908 = vmatprep.subr.bf16.mxu0 0
  %909 = vmatpush1.bf16.msra.mxu0 0
  %910 = vmatprep.subr.bf16.mxu0 0
  %911 = vmatpush1.bf16.msra.mxu0 0
  %912 = vmatprep.subr.bf16.mxu0 0
  %913 = vmatpush1.bf16.msra.mxu0 0
  %914 = vmatprep.subr.bf16.mxu0 0
  %915 = vmatpush1.bf16.msra.mxu0 0
  %916 = vmatprep.subr.bf16.mxu0 0
  %917 = vmatpush1.bf16.msra.mxu0 0
  %918 = vmatprep.subr.bf16.mxu0 0
  %919 = vmatpush1.bf16.msra.mxu0 0
  %920 = vmatprep.subr.bf16.mxu0 0
  %921 = vmatpush1.bf16.msra.mxu0 0
  %922 = vmatprep.mubr.bf16.mxu0 0
  %923 = vmatmul.mubr.bf16.gmra.mrb[0].mxu0 %v818
  %v924 = vpop.f32.mrb[0].mxu0
  %v925 = vadd.f32 %v840, %v924
  %v926 = vpop.f32.mrb[0].mxu0
  %v927 = vpop.f32.mrb[0].mxu0
  %v928 = vpop.f32.mrb[0].mxu0
  %929 = vdwg.mxu0
  %v930 = vmax.f32 %v925, 0.0
  %v931 = vpack.c.bf16 %v930, %v930
  %v932 = vld [vmem:[%s9] sm:$0xf]
  %v933 = vld [vmem:[%s9 + $0x4] sm:$0xf]
  %v934 = vld [vmem:[%s9 + $0x8] sm:$0xf]
  %v935 = vld [vmem:[%s9 + $0xc] sm:$0xf]
  %v936 = vld [vmem:[%s9 + $0x10] sm:$0xf]
  %v937 = vld [vmem:[%s9 + $0x14] sm:$0xf]
  %v938 = vld [vmem:[%s9 + $0x18] sm:$0xf]
  %v939 = vld [vmem:[%s9 + $0x1c] sm:$0xf]
  %v940 = vld [vmem:[%s9 + $0x20] sm:$0xf]
  %v941 = vld [vmem:[%s9 + $0x24] sm:$0xf]
  %v942 = vld [vmem:[%s9 + $0x28] sm:$0xf]
  %v943 = vld [vmem:[%s9 + $0x2c] sm:$0xf]
  %v944 = vld [vmem:[%s9 + $0x30] sm:$0xf]
  %v945 = vld [vmem:[%s9 + $0x34] sm:$0xf]
  %v946 = vld [vmem:[%s9 + $0x38] sm:$0xf]
  %v947 = vld [vmem:[%s9 + $0x3c] sm:$0xf]
  %v948 = vld [vmem:[%s10] sm:$0x1]
  %v950 = vlaneseq
  %v951 = vshrl.u32 %v950, 7
  %v952 = vsub.s32 0, %v951
  %v953 = vrot.slane %v948, %v952
  %v971 = vunpack.c.l.b16 %v932
  %v972 = vunpack.c.l.b16 %v933
  %v973 = vunpack.c.l.b16 %v934
  %v974 = vunpack.c.l.b16 %v935
  %v975 = vunpack.c.l.b16 %v936
  %v976 = vunpack.c.l.b16 %v937
  %v977 = vunpack.c.l.b16 %v938
  %v978 = vunpack.c.l.b16 %v939
  %v979 = vunpack.c.l.b16 %v940
  %v980 = vunpack.c.l.b16 %v941
  %v981 = vunpack.c.l.b16 %v942
  %v982 = vunpack.c.l.b16 %v943
  %v983 = vunpack.c.l.b16 %v944
  %v984 = vunpack.c.l.b16 %v945
  %v985 = vunpack.c.l.b16 %v946
  %v986 = vunpack.c.l.b16 %v947
  %v987 = vpack.c.b16 %v972, %v971
  %v988 = vpack.c.b16 %v974, %v973
  %v989 = vpack.c.b16 %v976, %v975
  %v990 = vpack.c.b16 %v978, %v977
  %v991 = vpack.c.b16 %v980, %v979
  %v992 = vpack.c.b16 %v982, %v981
  %v993 = vpack.c.b16 %v984, %v983
  %v994 = vpack.c.b16 %v986, %v985
  %1003 = vmatprep.subr.bf16.mxu0 0
  %1004 = vmatpush1.bf16.msra.mxu0 %v987
  %1005 = vmatprep.subr.bf16.mxu0 0
  %1006 = vmatpush1.bf16.msra.mxu0 %v988
  %1007 = vmatprep.subr.bf16.mxu0 0
  %1008 = vmatpush1.bf16.msra.mxu0 %v989
  %1009 = vmatprep.subr.bf16.mxu0 0
  %1010 = vmatpush1.bf16.msra.mxu0 %v990
  %1011 = vmatprep.subr.bf16.mxu0 0
  %1012 = vmatpush1.bf16.msra.mxu0 %v991
  %1013 = vmatprep.subr.bf16.mxu0 0
  %1014 = vmatpush1.bf16.msra.mxu0 %v992
  %1015 = vmatprep.subr.bf16.mxu0 0
  %1016 = vmatpush1.bf16.msra.mxu0 %v993
  %1017 = vmatprep.subr.bf16.mxu0 0
  %1018 = vmatpush1.bf16.msra.mxu0 %v994
  %1019 = vmatprep.subr.bf16.mxu0 0
  %1020 = vmatpush1.bf16.msra.mxu0 0
  %1021 = vmatprep.subr.bf16.mxu0 0
  %1022 = vmatpush1.bf16.msra.mxu0 0
  %1023 = vmatprep.subr.bf16.mxu0 0
  %1024 = vmatpush1.bf16.msra.mxu0 0
  %1025 = vmatprep.subr.bf16.mxu0 0
  %1026 = vmatpush1.bf16.msra.mxu0 0
  %1027 = vmatprep.subr.bf16.mxu0 0
  %1028 = vmatpush1.bf16.msra.mxu0 0
  %1029 = vmatprep.subr.bf16.mxu0 0
  %1030 = vmatpush1.bf16.msra.mxu0 0
  %1031 = vmatprep.subr.bf16.mxu0 0
  %1032 = vmatpush1.bf16.msra.mxu0 0
  %1033 = vmatprep.subr.bf16.mxu0 0
  %1034 = vmatpush1.bf16.msra.mxu0 0
  %1035 = vmatprep.mubr.bf16.mxu0 0
  %1036 = vmatmul.mubr.bf16.gmra.mrb[0].mxu0 %v931
  %v1037 = vpop.f32.mrb[0].mxu0
  %v1038 = vadd.f32 %v953, %v1037
  %v1039 = vpop.f32.mrb[0].mxu0
  %v1040 = vpop.f32.mrb[0].mxu0
  %v1041 = vpop.f32.mrb[0].mxu0
  %1042 = vdwg.mxu0
  %v1043 = vpack.c.bf16 %v1038, %v1038
  %1044 = vst [vmem:[%s11] sm:$0x1] %v1043
  // Predicated region
  $region46: #{mlp_classifier_deep_forward.1} parent=0 // pred_check
    _
  $region47: #{mlp_classifier_deep_forward.1} parent=0 // pred_check_branch
    %1046 = sbr.rel (0) target = $region49
  $region48: #{mlp_classifier_deep_forward.1} parent=0 // pred_region
    _
  $region49: #{mlp_classifier_deep_forward.1} parent=0 // pred_fallthru
    _
  // Predicated region
  $region50: #{mlp_classifier_deep_forward.1} parent=0 // pred_check
    _
  $region51: #{mlp_classifier_deep_forward.1} parent=0 // pred_check_branch
    %1048 = sbr.rel (0) target = $region53
  $region52: #{mlp_classifier_deep_forward.1} parent=0 // pred_region
    _
  $region53: #{mlp_classifier_deep_forward.1} parent=0 // pred_fallthru
    _

</llo_original>
